<compile_context>
chip_gen: v5e
topology: v5e:2x2
jax: 0.10.0
libtpu: 0.0.40
codegen_flags: <defaults>
</compile_context>

<pallas_src>
import functools

import jax
import jax.numpy as jnp
from jax.experimental import pallas as pl
from jax.experimental.pallas import tpu as pltpu

_HIDDEN = (128, 64, 32, 16, 8, 2)


def _round_up(x, m):
    return ((x + m - 1) // m) * m


def _layer_dims(in_features):
    return (in_features,) + _HIDDEN


def _pack_offsets(in_features):
    """Row offset of each layer's weight tile inside the packed slab.

    Layer 0 occupies round_up(in_features, 128) rows; every other layer
    occupies a full 128-row tile (rows beyond the real fan-in are zero).
    """
    l0 = _round_up(in_features, 128)
    offs = (0, l0, l0 + 128, l0 + 256, l0 + 384, l0 + 512)
    total = l0 + 5 * 128
    return offs, total


def pack_params(params):
    """Pack [(w1,b1),...,(w6,b6)] (w: (in,out), b: (1,out) or (out,)) into one
    bf16 weight slab (rows, 128) of stacked 128-lane tiles and one f32 bias
    slab (8, 128).  All padding is zero (keeps padded activation cols == 0)."""
    in_features = params[0][0].shape[0]
    dims = _layer_dims(in_features)
    offs, total = _pack_offsets(in_features)
    wpack = jnp.zeros((total, 128), jnp.bfloat16)
    bpack = jnp.zeros((8, 128), jnp.float32)
    for li, (w, b) in enumerate(params):
        fi, fo = dims[li], dims[li + 1]
        wpack = wpack.at[offs[li]:offs[li] + fi, :fo].set(w.astype(jnp.bfloat16))
        bpack = bpack.at[li, :fo].set(b.reshape(-1).astype(jnp.float32))
    return wpack, bpack


def _mlp_kernel(x_ref, w_ref, b_ref, o_ref, *, in_features, offs):
    """One batch tile of the full MLP; packed weights/biases VMEM-resident.

    Every dot after layer 0 is a lane-dense (TB,128)x(128,128); the final
    store is a lane-dense (TB,128) f32 block (cols 2..127 are zero)."""
    # In-kernel cast: the f32 x tile is DMA'd as-is, cast is VPU work hidden
    # under the DMA/MXU pipeline.
    h = x_ref[...].astype(jnp.bfloat16)                       # (TB, in_features)

    # Layer 0: only the real fan-in rows of the first weight tile.
    y = jnp.dot(h, w_ref[0:in_features, :],
                preferred_element_type=jnp.float32) + b_ref[0:1, :]
    h = jnp.maximum(y, 0.0).astype(jnp.bfloat16)              # (TB, 128)

    # Layers 1..5: full 128x128 tiles.  Padded rows/cols are zero and padded
    # activation columns are exactly zero, so results match the narrow math.
    for li in range(1, 6):
        w = w_ref[offs[li]:offs[li] + 128, :]                 # (128, 128) bf16
        y = jnp.dot(h, w, preferred_element_type=jnp.float32) + b_ref[li:li + 1, :]
        if li < 5:
            h = jnp.maximum(y, 0.0).astype(jnp.bfloat16)      # ReLU; dropout = id (eval)
        else:
            o_ref[...] = y.astype(o_ref.dtype)                # final layer: no ReLU


def _pick_tile(B, block_batch):
    """Batch tile: multiple of 16 (bf16 sublane packing), as large as the
    batch allows, but split into >=2 grid steps when possible so the
    'parallel' grid axis can shard across v7x's two TensorCores."""
    block_batch = max(16, _round_up(block_batch, 16))
    tb_full = _round_up(B, 16)
    if tb_full <= block_batch:
        if B > 16:
            return max(16, _round_up(pl.cdiv(B, 2), 16))      # >= 2 grid steps
        return tb_full                                        # tiny batch: 1 step
    return block_batch


@functools.partial(jax.jit, static_argnames=("block_batch",))
def network_forward(x, wpack, bpack, block_batch=2048):
    """x: (B, in_features) f32/bf16; wpack/bpack from pack_params()."""
    B, in_features = x.shape
    offs, total = _pack_offsets(in_features)
    assert wpack.shape == (total, 128), wpack.shape
    assert bpack.shape == (8, 128), bpack.shape

    TB = _pick_tile(B, block_batch)
    B_pad = _round_up(B, TB)

    x_in = x
    if B_pad != B:                      # pad only when needed; no dtype pass
        x_in = jnp.pad(x_in, ((0, B_pad - B), (0, 0)))

    kernel = functools.partial(_mlp_kernel, in_features=in_features, offs=offs)

    out = pl.pallas_call(
        kernel,
        out_shape=jax.ShapeDtypeStruct((B_pad, 128), jnp.float32),
        grid=(B_pad // TB,),
        in_specs=[
            pl.BlockSpec((TB, in_features), lambda i: (i, 0)),   # batch-tiled x
            pl.BlockSpec(wpack.shape, lambda i: (0, 0)),         # resident weights
            pl.BlockSpec(bpack.shape, lambda i: (0, 0)),         # resident biases
        ],
        out_specs=pl.BlockSpec((TB, 128), lambda i: (i, 0)),     # lane-dense store
        compiler_params=pltpu.CompilerParams(
            dimension_semantics=("parallel",),                   # megacore on v7x
            vmem_limit_bytes=48 * 1024 * 1024,                   # headroom on v5e
        ),
    )(x_in, wpack, bpack)

    return out[:B, :2]


def init_params(key, in_features):
    """PyTorch nn.Linear default init: U[-k, k], k = 1/sqrt(fan_in)."""
    dims = _layer_dims(in_features)
    params = []
    for li in range(6):
        fan_in, fan_out = dims[li], dims[li + 1]
        key, kw, kb = jax.random.split(key, 3)
        bound = 1.0 / jnp.sqrt(jnp.float32(fan_in))
        w = jax.random.uniform(kw, (fan_in, fan_out), jnp.float32, -bound, bound)
        b = jax.random.uniform(kb, (1, fan_out), jnp.float32, -bound, bound)
        params.append((w, b))
    return params


def reference_forward(x, params):
    """Plain-JAX reference with matching numerics (bf16 inputs/weights,
    f32 accumulate, eval-mode dropout = identity)."""
    h = x.astype(jnp.bfloat16)
    for li, (w, b) in enumerate(params):
        y = jnp.dot(h, w.astype(jnp.bfloat16),
                    preferred_element_type=jnp.float32) + b.astype(jnp.float32)
        if li < 5:
            h = jnp.maximum(y, 0.0).astype(jnp.bfloat16)
        else:
            return y


if __name__ == "__main__":
    IN_FEATURES = 32   # "i" in Network(i)

    key = jax.random.PRNGKey(0)
    params = init_params(key, IN_FEATURES)
    wpack, bpack = pack_params(params)

    # Case 1: tiny batch, single grid step (TB=16, padded from 8 rows).
    key, kx = jax.random.split(key)
    x = jax.random.normal(kx, (8, IN_FEATURES), jnp.float32)
    out = jax.block_until_ready(network_forward(x, wpack, bpack))
    ref = reference_forward(x, params)
    assert out.shape == (8, 2), out.shape
    assert jnp.allclose(out, ref, atol=1e-2, rtol=1e-2), (
        f"mismatch (case 1): max abs err = {jnp.max(jnp.abs(out - ref))}")

    # Case 2: batch not a tile multiple + >=2 grid steps (tests batch tiling,
    # padding path, and the parallel grid with TB=16).
    key, kx = jax.random.split(key)
    x2 = jax.random.normal(kx, (20, IN_FEATURES), jnp.float32)
    out2 = jax.block_until_ready(network_forward(x2, wpack, bpack, block_batch=16))
    ref2 = reference_forward(x2, params)
    assert out2.shape == (20, 2), out2.shape
    assert jnp.allclose(out2, ref2, atol=1e-2, rtol=1e-2), (
        f"mismatch (case 2): max abs err = {jnp.max(jnp.abs(out2 - ref2))}")

    # Case 3: default large block_batch with a batch that splits into 2 tiles.
    key, kx = jax.random.split(key)
    x3 = jax.random.normal(kx, (100, IN_FEATURES), jnp.float32)
    out3 = jax.block_until_ready(network_forward(x3, wpack, bpack))
    ref3 = reference_forward(x3, params)
    assert out3.shape == (100, 2), out3.shape
    assert jnp.allclose(out3, ref3, atol=1e-2, rtol=1e-2), (
        f"mismatch (case 3): max abs err = {jnp.max(jnp.abs(out3 - ref3))}")

    print("KERNEL_OK")
</pallas_src>

<mosaic_0001>
module attributes {stable_mosaic.version = 11 : i64} {
  func.func @_mlp_kernel(%arg0: i32, %arg1: memref<16x32xf32, #tpu.memory_space<vmem>>, %arg2: memref<768x128xbf16, #tpu.memory_space<vmem>>, %arg3: memref<8x128xf32, #tpu.memory_space<vmem>>, %arg4: memref<16x128xf32, #tpu.memory_space<vmem>>) attributes {dimension_semantics = [#tpu.dimension_semantics<parallel>], iteration_bounds = array<i64: 1>, scalar_prefetch = 0 : i64, scratch_operands = 0 : i64, tpu.core_type = #tpu.core_type<tc>, window_params = [{transform_indices = @transform_0, window_bounds = array<i64: 16, 32>}, {pipeline_mode = #tpu.pipeline_mode<synchronous>, transform_indices = @transform_1, window_bounds = array<i64: 768, 128>}, {pipeline_mode = #tpu.pipeline_mode<synchronous>, transform_indices = @transform_2, window_bounds = array<i64: 8, 128>}, {transform_indices = @transform_3, window_bounds = array<i64: 16, 128>}]} {
    %c0 = arith.constant 0 : index
    %c0_0 = arith.constant 0 : index
    %0 = vector.load %arg1[%c0, %c0_0] : memref<16x32xf32, #tpu.memory_space<vmem>>, vector<16x32xf32>
    %1 = arith.truncf %0 : vector<16x32xf32> to vector<16x32xbf16>
    %c0_1 = arith.constant 0 : index
    %c0_2 = arith.constant 0 : index
    %2 = vector.load %arg2[%c0_1, %c0_2] : memref<768x128xbf16, #tpu.memory_space<vmem>>, vector<32x128xbf16>
    %cst = arith.constant dense<0.000000e+00> : vector<16x128xf32>
    %3 = tpu.matmul %1, %2, %cst {dimension_numbers = #tpu.dot_dimension_numbers<[1], [0], [0], [1], [0, 0, 1, 1], [], []>} : vector<16x32xbf16>, vector<32x128xbf16>, vector<16x128xf32> -> vector<16x128xf32>
    %c0_3 = arith.constant 0 : index
    %c0_4 = arith.constant 0 : index
    %4 = vector.load %arg3[%c0_3, %c0_4] : memref<8x128xf32, #tpu.memory_space<vmem>>, vector<1x128xf32>
    %5 = vector.broadcast %4 : vector<1x128xf32> to vector<16x128xf32>
    %6 = arith.addf %3, %5 : vector<16x128xf32>
    %cst_5 = arith.constant 0.000000e+00 : f32
    %7 = vector.broadcast %cst_5 : f32 to vector<16x128xf32>
    %8 = arith.maximumf %6, %7 : vector<16x128xf32>
    %9 = arith.truncf %8 : vector<16x128xf32> to vector<16x128xbf16>
    %c128 = arith.constant 128 : index
    %c0_6 = arith.constant 0 : index
    %10 = vector.load %arg2[%c128, %c0_6] : memref<768x128xbf16, #tpu.memory_space<vmem>>, vector<128x128xbf16>
    %cst_7 = arith.constant dense<0.000000e+00> : vector<16x128xf32>
    %11 = tpu.matmul %9, %10, %cst_7 {dimension_numbers = #tpu.dot_dimension_numbers<[1], [0], [0], [1], [0, 0, 1, 1], [], []>} : vector<16x128xbf16>, vector<128x128xbf16>, vector<16x128xf32> -> vector<16x128xf32>
    %c1 = arith.constant 1 : index
    %c0_8 = arith.constant 0 : index
    %12 = vector.load %arg3[%c1, %c0_8] : memref<8x128xf32, #tpu.memory_space<vmem>>, vector<1x128xf32>
    %13 = vector.broadcast %12 : vector<1x128xf32> to vector<16x128xf32>
    %14 = arith.addf %11, %13 : vector<16x128xf32>
    %cst_9 = arith.constant 0.000000e+00 : f32
    %15 = vector.broadcast %cst_9 : f32 to vector<16x128xf32>
    %16 = arith.maximumf %14, %15 : vector<16x128xf32>
    %17 = arith.truncf %16 : vector<16x128xf32> to vector<16x128xbf16>
    %c256 = arith.constant 256 : index
    %c0_10 = arith.constant 0 : index
    %18 = vector.load %arg2[%c256, %c0_10] : memref<768x128xbf16, #tpu.memory_space<vmem>>, vector<128x128xbf16>
    %cst_11 = arith.constant dense<0.000000e+00> : vector<16x128xf32>
    %19 = tpu.matmul %17, %18, %cst_11 {dimension_numbers = #tpu.dot_dimension_numbers<[1], [0], [0], [1], [0, 0, 1, 1], [], []>} : vector<16x128xbf16>, vector<128x128xbf16>, vector<16x128xf32> -> vector<16x128xf32>
    %c2 = arith.constant 2 : index
    %c0_12 = arith.constant 0 : index
    %20 = vector.load %arg3[%c2, %c0_12] : memref<8x128xf32, #tpu.memory_space<vmem>>, vector<1x128xf32>
    %21 = vector.broadcast %20 : vector<1x128xf32> to vector<16x128xf32>
    %22 = arith.addf %19, %21 : vector<16x128xf32>
    %cst_13 = arith.constant 0.000000e+00 : f32
    %23 = vector.broadcast %cst_13 : f32 to vector<16x128xf32>
    %24 = arith.maximumf %22, %23 : vector<16x128xf32>
    %25 = arith.truncf %24 : vector<16x128xf32> to vector<16x128xbf16>
    %c384 = arith.constant 384 : index
    %c0_14 = arith.constant 0 : index
    %26 = vector.load %arg2[%c384, %c0_14] : memref<768x128xbf16, #tpu.memory_space<vmem>>, vector<128x128xbf16>
    %cst_15 = arith.constant dense<0.000000e+00> : vector<16x128xf32>
    %27 = tpu.matmul %25, %26, %cst_15 {dimension_numbers = #tpu.dot_dimension_numbers<[1], [0], [0], [1], [0, 0, 1, 1], [], []>} : vector<16x128xbf16>, vector<128x128xbf16>, vector<16x128xf32> -> vector<16x128xf32>
    %c3 = arith.constant 3 : index
    %c0_16 = arith.constant 0 : index
    %28 = vector.load %arg3[%c3, %c0_16] : memref<8x128xf32, #tpu.memory_space<vmem>>, vector<1x128xf32>
    %29 = vector.broadcast %28 : vector<1x128xf32> to vector<16x128xf32>
    %30 = arith.addf %27, %29 : vector<16x128xf32>
    %cst_17 = arith.constant 0.000000e+00 : f32
    %31 = vector.broadcast %cst_17 : f32 to vector<16x128xf32>
    %32 = arith.maximumf %30, %31 : vector<16x128xf32>
    %33 = arith.truncf %32 : vector<16x128xf32> to vector<16x128xbf16>
    %c512 = arith.constant 512 : index
    %c0_18 = arith.constant 0 : index
    %34 = vector.load %arg2[%c512, %c0_18] : memref<768x128xbf16, #tpu.memory_space<vmem>>, vector<128x128xbf16>
    %cst_19 = arith.constant dense<0.000000e+00> : vector<16x128xf32>
    %35 = tpu.matmul %33, %34, %cst_19 {dimension_numbers = #tpu.dot_dimension_numbers<[1], [0], [0], [1], [0, 0, 1, 1], [], []>} : vector<16x128xbf16>, vector<128x128xbf16>, vector<16x128xf32> -> vector<16x128xf32>
    %c4 = arith.constant 4 : index
    %c0_20 = arith.constant 0 : index
    %36 = vector.load %arg3[%c4, %c0_20] : memref<8x128xf32, #tpu.memory_space<vmem>>, vector<1x128xf32>
    %37 = vector.broadcast %36 : vector<1x128xf32> to vector<16x128xf32>
    %38 = arith.addf %35, %37 : vector<16x128xf32>
    %cst_21 = arith.constant 0.000000e+00 : f32
    %39 = vector.broadcast %cst_21 : f32 to vector<16x128xf32>
    %40 = arith.maximumf %38, %39 : vector<16x128xf32>
    %41 = arith.truncf %40 : vector<16x128xf32> to vector<16x128xbf16>
    %c640 = arith.constant 640 : index
    %c0_22 = arith.constant 0 : index
    %42 = vector.load %arg2[%c640, %c0_22] : memref<768x128xbf16, #tpu.memory_space<vmem>>, vector<128x128xbf16>
    %cst_23 = arith.constant dense<0.000000e+00> : vector<16x128xf32>
    %43 = tpu.matmul %41, %42, %cst_23 {dimension_numbers = #tpu.dot_dimension_numbers<[1], [0], [0], [1], [0, 0, 1, 1], [], []>} : vector<16x128xbf16>, vector<128x128xbf16>, vector<16x128xf32> -> vector<16x128xf32>
    %c5 = arith.constant 5 : index
    %c0_24 = arith.constant 0 : index
    %44 = vector.load %arg3[%c5, %c0_24] : memref<8x128xf32, #tpu.memory_space<vmem>>, vector<1x128xf32>
    %45 = vector.broadcast %44 : vector<1x128xf32> to vector<16x128xf32>
    %46 = arith.addf %43, %45 : vector<16x128xf32>
    %c0_25 = arith.constant 0 : index
    %c0_26 = arith.constant 0 : index
    %47 = vector.load %arg4[%c0_25, %c0_26] : memref<16x128xf32, #tpu.memory_space<vmem>>, vector<16x128xf32>
    tpu.vector_store %arg4[%c0_25, %c0_26], %46 {strides = array<i32>} : memref<16x128xf32, #tpu.memory_space<vmem>>, vector<16x128xf32>,
    return
  }
  func.func @transform_0(%arg0: i32) -> (i32, i32) {
    %c0_i32 = arith.constant 0 : i32
    %c0_i32_0 = arith.constant 0 : i32
    return %arg0, %c0_i32 : i32, i32
  }
  func.func @transform_1(%arg0: i32) -> (i32, i32) {
    %c0_i32 = arith.constant 0 : i32
    %c0_i32_0 = arith.constant 0 : i32
    %c0_i32_1 = arith.constant 0 : i32
    return %c0_i32, %c0_i32_0 : i32, i32
  }
  func.func @transform_2(%arg0: i32) -> (i32, i32) {
    %c0_i32 = arith.constant 0 : i32
    %c0_i32_0 = arith.constant 0 : i32
    %c0_i32_1 = arith.constant 0 : i32
    return %c0_i32, %c0_i32_0 : i32, i32
  }
  func.func @transform_3(%arg0: i32) -> (i32, i32) {
    %c0_i32 = arith.constant 0 : i32
    %c0_i32_0 = arith.constant 0 : i32
    return %arg0, %c0_i32 : i32, i32
  }
}

</mosaic_0001>

<llo_original>
// kernel: network_forward.1
$region0: #{network_forward.1}
  #allocation0 [shape = 'u32[]', space=smem, size = 0x4, offset = 0x4, fixed_abs, tag = 'smem constant byte address 0x4 - core index']
  #allocation1 [shape = 'u32[72,128]{1,0:T(1,128)}', space=vmem, size = 0x9000, scoped, tag = 'internal scratch']
  %s0 = inlined_call_operand.vmem [shape: f32[16,32], index: 0, kind: input, shape index: {}]
  %s1 = inlined_call_operand.hbm [shape: bf16[768,128], index: 1, kind: input, shape index: {}]
  %s2 = inlined_call_operand.vmem [shape: f32[8,128], index: 2, kind: input, shape index: {}]
  %s3 = inlined_call_operand.vmem [shape: f32[16,128], index: 3, kind: output, shape index: {}]
  %s4 = sld [smem:[#allocation0]]
  $region26: #{network_forward.1} parent=0
    _
  %s6 = ssub.s32 1, %s4
  %s7 = scalar_select 0, %s6, %s4
  $region1: #{network_forward.1} parent=0
    #allocation2 [shape = 'u8[196608]{0}', space=vmem, size = 0x30000, scoped, tag = 'input window, operand 1, single buffered']
    #allocation3 [shape = 's32[1]{0}', space=sflag, size = 0x4, scoped, tag = 'scoped memory for network_forward.1']
    %8 = vsyncpa [#allocation3], 0
    // Predicated region
    $region2: #{network_forward.1} parent=1 // pred_check
      _
    $region3: #{network_forward.1} parent=1 // pred_check_branch
      %10 = sbr.rel (0) target = $region5
    $region4: #{network_forward.1} parent=1 // pred_region
      _
    $region5: #{network_forward.1} parent=1 // pred_fallthru
      _
    // Predicated region
    $region6: #{network_forward.1} parent=1 // pred_check
      _
    $region7: #{network_forward.1} parent=1 // pred_check_branch
      %12 = sbr.rel (0) target = $region9
    $region8: #{network_forward.1} parent=1 // pred_region
      %14 = vsyncadd [#allocation3], 0
      %s15 = sshll.u32 %s1, 4
      %s16 = int_to_ptr.hbm [resolvable:$true] %s15
      %s17 = sshll.u32 [#allocation2], 4
      %s18 = int_to_ptr.vmem [resolvable:$true] %s17
      %23 = dma.hbm_to_vmem [thread:$0]  %s16, 6144, %s18, [#allocation3], 64, 64, 4
    $region9: #{network_forward.1} parent=1 // pred_fallthru
      _
    // Predicated region
    $region10: #{network_forward.1} parent=1 // pred_check
      _
    $region11: #{network_forward.1} parent=1 // pred_check_branch
      %25 = sbr.rel (0) target = $region13
    $region12: #{network_forward.1} parent=1 // pred_region
      _
    $region13: #{network_forward.1} parent=1 // pred_fallthru
      _
    // Predicated region
    $region14: #{network_forward.1} parent=1 // pred_check
      _
    $region15: #{network_forward.1} parent=1 // pred_check_branch
      %27 = sbr.rel (0) target = $region17
    $region16: #{network_forward.1} parent=1 // pred_region
      %29 = dma.done [#allocation3], 6144
    $region17: #{network_forward.1} parent=1 // pred_fallthru
      _
    %v31 = vld [vmem:[%s0] sm:$0xff]
    %v32 = vld [vmem:[%s0 + $0x8] sm:$0xff]
    %v33 = vpack.c.bf16 %v32, %v31
    %v34 = vld [vmem:[#allocation2] sm:$0xf]
    %v35 = vld [vmem:[#allocation2 + $0x4] sm:$0xf]
    %v36 = vld [vmem:[#allocation2 + $0x8] sm:$0xf]
    %v37 = vld [vmem:[#allocation2 + $0xc] sm:$0xf]
    %v38 = vld [vmem:[%s2] sm:$0x1]
    %v39 = vperm.slane %v38, 0
    %v44 = vunpack.c.l.b16 %v34
    %v45 = vunpack.c.l.b16 %v35
    %v46 = vunpack.c.l.b16 %v36
    %v47 = vunpack.c.l.b16 %v37
    %v48 = vpack.c.b16 %v45, %v44
    %v49 = vpack.c.b16 %v47, %v46
    %vm52 = vcmask 261120
    %v54 = vsel %vm52, %v33, 0
    %56 = vmatpush.bf16.msra.mxu0 0
    %57 = vmatpush.bf16.msra.mxu0 0
    %58 = vmatpush.bf16.msra.mxu0 0
    %59 = vmatpush.bf16.msra.mxu0 0
    %60 = vmatpush.bf16.msra.mxu0 0
    %61 = vmatpush.bf16.msra.mxu0 0
    %62 = vmatpush.bf16.msra.mxu0 %v49
    %63 = vmatpush.bf16.msra.mxu0 %v48
    %64 = vmatmul.bf16.gmra.mxu0 %v54
    %v65 = vpop.f32.mrf.mxu0
    %v66 = vadd.f32 %v39, %v65
    %v67 = vpop.f32.mrf.mxu0
    %v68 = vadd.f32 %v39, %v67
    %69 = vdwg.mxu0
    %v70 = vmax.f32 %v66, 0.0
    %v71 = vmax.f32 %v68, 0.0
    %v72 = vpack.c.bf16 %v71, %v70
    %v73 = vld [vmem:[#allocation2 + $0x40] sm:$0xf]
    %v74 = vld [vmem:[#allocation2 + $0x44] sm:$0xf]
    %v75 = vld [vmem:[#allocation2 + $0x48] sm:$0xf]
    %v76 = vld [vmem:[#allocation2 + $0x4c] sm:$0xf]
    %v77 = vld [vmem:[#allocation2 + $0x50] sm:$0xf]
    %v78 = vld [vmem:[#allocation2 + $0x54] sm:$0xf]
    %v79 = vld [vmem:[#allocation2 + $0x58] sm:$0xf]
    %v80 = vld [vmem:[#allocation2 + $0x5c] sm:$0xf]
    %v81 = vld [vmem:[#allocation2 + $0x60] sm:$0xf]
    %v82 = vld [vmem:[#allocation2 + $0x64] sm:$0xf]
    %v83 = vld [vmem:[#allocation2 + $0x68] sm:$0xf]
    %v84 = vld [vmem:[#allocation2 + $0x6c] sm:$0xf]
    %v85 = vld [vmem:[#allocation2 + $0x70] sm:$0xf]
    %v86 = vld [vmem:[#allocation2 + $0x74] sm:$0xf]
    %v87 = vld [vmem:[#allocation2 + $0x78] sm:$0xf]
    %v88 = vld [vmem:[#allocation2 + $0x7c] sm:$0xf]
    %v89 = vld [vmem:[%s2 + $0x1] sm:$0x1]
    %v90 = vperm.slane %v89, 0
    %v107 = vunpack.c.l.b16 %v73
    %v108 = vunpack.c.l.b16 %v74
    %v109 = vunpack.c.l.b16 %v75
    %v110 = vunpack.c.l.b16 %v76
    %v111 = vunpack.c.l.b16 %v77
    %v112 = vunpack.c.l.b16 %v78
    %v113 = vunpack.c.l.b16 %v79
    %v114 = vunpack.c.l.b16 %v80
    %v115 = vunpack.c.l.b16 %v81
    %v116 = vunpack.c.l.b16 %v82
    %v117 = vunpack.c.l.b16 %v83
    %v118 = vunpack.c.l.b16 %v84
    %v119 = vunpack.c.l.b16 %v85
    %v120 = vunpack.c.l.b16 %v86
    %v121 = vunpack.c.l.b16 %v87
    %v122 = vunpack.c.l.b16 %v88
    %v123 = vpack.c.b16 %v108, %v107
    %v124 = vpack.c.b16 %v110, %v109
    %v125 = vpack.c.b16 %v112, %v111
    %v126 = vpack.c.b16 %v114, %v113
    %v127 = vpack.c.b16 %v116, %v115
    %v128 = vpack.c.b16 %v118, %v117
    %v129 = vpack.c.b16 %v120, %v119
    %v130 = vpack.c.b16 %v122, %v121
    %139 = vmatpush.bf16.msra.mxu0 %v130
    %140 = vmatpush.bf16.msra.mxu0 %v129
    %141 = vmatpush.bf16.msra.mxu0 %v128
    %142 = vmatpush.bf16.msra.mxu0 %v127
    %143 = vmatpush.bf16.msra.mxu0 %v126
    %144 = vmatpush.bf16.msra.mxu0 %v125
    %145 = vmatpush.bf16.msra.mxu0 %v124
    %146 = vmatpush.bf16.msra.mxu0 %v123
    %147 = vmatmul.bf16.gmra.mxu0 %v72
    %v148 = vpop.f32.mrf.mxu0
    %v149 = vadd.f32 %v90, %v148
    %v150 = vpop.f32.mrf.mxu0
    %v151 = vadd.f32 %v90, %v150
    %152 = vdwg.mxu0
    %v153 = vmax.f32 %v149, 0.0
    %v154 = vmax.f32 %v151, 0.0
    %v155 = vpack.c.bf16 %v154, %v153
    %v156 = vld [vmem:[#allocation2 + $0x80] sm:$0xf]
    %v157 = vld [vmem:[#allocation2 + $0x84] sm:$0xf]
    %v158 = vld [vmem:[#allocation2 + $0x88] sm:$0xf]
    %v159 = vld [vmem:[#allocation2 + $0x8c] sm:$0xf]
    %v160 = vld [vmem:[#allocation2 + $0x90] sm:$0xf]
    %v161 = vld [vmem:[#allocation2 + $0x94] sm:$0xf]
    %v162 = vld [vmem:[#allocation2 + $0x98] sm:$0xf]
    %v163 = vld [vmem:[#allocation2 + $0x9c] sm:$0xf]
    %v164 = vld [vmem:[#allocation2 + $0xa0] sm:$0xf]
    %v165 = vld [vmem:[#allocation2 + $0xa4] sm:$0xf]
    %v166 = vld [vmem:[#allocation2 + $0xa8] sm:$0xf]
    %v167 = vld [vmem:[#allocation2 + $0xac] sm:$0xf]
    %v168 = vld [vmem:[#allocation2 + $0xb0] sm:$0xf]
    %v169 = vld [vmem:[#allocation2 + $0xb4] sm:$0xf]
    %v170 = vld [vmem:[#allocation2 + $0xb8] sm:$0xf]
    %v171 = vld [vmem:[#allocation2 + $0xbc] sm:$0xf]
    %v172 = vld [vmem:[%s2 + $0x2] sm:$0x1]
    %v173 = vperm.slane %v172, 0
    %v190 = vunpack.c.l.b16 %v156
    %v191 = vunpack.c.l.b16 %v157
    %v192 = vunpack.c.l.b16 %v158
    %v193 = vunpack.c.l.b16 %v159
    %v194 = vunpack.c.l.b16 %v160
    %v195 = vunpack.c.l.b16 %v161
    %v196 = vunpack.c.l.b16 %v162
    %v197 = vunpack.c.l.b16 %v163
    %v198 = vunpack.c.l.b16 %v164
    %v199 = vunpack.c.l.b16 %v165
    %v200 = vunpack.c.l.b16 %v166
    %v201 = vunpack.c.l.b16 %v167
    %v202 = vunpack.c.l.b16 %v168
    %v203 = vunpack.c.l.b16 %v169
    %v204 = vunpack.c.l.b16 %v170
    %v205 = vunpack.c.l.b16 %v171
    %v206 = vpack.c.b16 %v191, %v190
    %v207 = vpack.c.b16 %v193, %v192
    %v208 = vpack.c.b16 %v195, %v194
    %v209 = vpack.c.b16 %v197, %v196
    %v210 = vpack.c.b16 %v199, %v198
    %v211 = vpack.c.b16 %v201, %v200
    %v212 = vpack.c.b16 %v203, %v202
    %v213 = vpack.c.b16 %v205, %v204
    %222 = vmatpush.bf16.msra.mxu0 %v213
    %223 = vmatpush.bf16.msra.mxu0 %v212
    %224 = vmatpush.bf16.msra.mxu0 %v211
    %225 = vmatpush.bf16.msra.mxu0 %v210
    %226 = vmatpush.bf16.msra.mxu0 %v209
    %227 = vmatpush.bf16.msra.mxu0 %v208
    %228 = vmatpush.bf16.msra.mxu0 %v207
    %229 = vmatpush.bf16.msra.mxu0 %v206
    %230 = vmatmul.bf16.gmra.mxu0 %v155
    %v231 = vpop.f32.mrf.mxu0
    %v232 = vadd.f32 %v173, %v231
    %v233 = vpop.f32.mrf.mxu0
    %v234 = vadd.f32 %v173, %v233
    %235 = vdwg.mxu0
    %v236 = vmax.f32 %v232, 0.0
    %v237 = vmax.f32 %v234, 0.0
    %v238 = vpack.c.bf16 %v237, %v236
    %v239 = vld [vmem:[#allocation2 + $0xc0] sm:$0xf]
    %v240 = vld [vmem:[#allocation2 + $0xc4] sm:$0xf]
    %v241 = vld [vmem:[#allocation2 + $0xc8] sm:$0xf]
    %v242 = vld [vmem:[#allocation2 + $0xcc] sm:$0xf]
    %v243 = vld [vmem:[#allocation2 + $0xd0] sm:$0xf]
    %v244 = vld [vmem:[#allocation2 + $0xd4] sm:$0xf]
    %v245 = vld [vmem:[#allocation2 + $0xd8] sm:$0xf]
    %v246 = vld [vmem:[#allocation2 + $0xdc] sm:$0xf]
    %v247 = vld [vmem:[#allocation2 + $0xe0] sm:$0xf]
    %v248 = vld [vmem:[#allocation2 + $0xe4] sm:$0xf]
    %v249 = vld [vmem:[#allocation2 + $0xe8] sm:$0xf]
    %v250 = vld [vmem:[#allocation2 + $0xec] sm:$0xf]
    %v251 = vld [vmem:[#allocation2 + $0xf0] sm:$0xf]
    %v252 = vld [vmem:[#allocation2 + $0xf4] sm:$0xf]
    %v253 = vld [vmem:[#allocation2 + $0xf8] sm:$0xf]
    %v254 = vld [vmem:[#allocation2 + $0xfc] sm:$0xf]
    %v255 = vld [vmem:[%s2 + $0x3] sm:$0x1]
    %v256 = vperm.slane %v255, 0
    %v273 = vunpack.c.l.b16 %v239
    %v274 = vunpack.c.l.b16 %v240
    %v275 = vunpack.c.l.b16 %v241
    %v276 = vunpack.c.l.b16 %v242
    %v277 = vunpack.c.l.b16 %v243
    %v278 = vunpack.c.l.b16 %v244
    %v279 = vunpack.c.l.b16 %v245
    %v280 = vunpack.c.l.b16 %v246
    %v281 = vunpack.c.l.b16 %v247
    %v282 = vunpack.c.l.b16 %v248
    %v283 = vunpack.c.l.b16 %v249
    %v284 = vunpack.c.l.b16 %v250
    %v285 = vunpack.c.l.b16 %v251
    %v286 = vunpack.c.l.b16 %v252
    %v287 = vunpack.c.l.b16 %v253
    %v288 = vunpack.c.l.b16 %v254
    %v289 = vpack.c.b16 %v274, %v273
    %v290 = vpack.c.b16 %v276, %v275
    %v291 = vpack.c.b16 %v278, %v277
    %v292 = vpack.c.b16 %v280, %v279
    %v293 = vpack.c.b16 %v282, %v281
    %v294 = vpack.c.b16 %v284, %v283
    %v295 = vpack.c.b16 %v286, %v285
    %v296 = vpack.c.b16 %v288, %v287
    %305 = vmatpush.bf16.msra.mxu0 %v296
    %306 = vmatpush.bf16.msra.mxu0 %v295
    %307 = vmatpush.bf16.msra.mxu0 %v294
    %308 = vmatpush.bf16.msra.mxu0 %v293
    %309 = vmatpush.bf16.msra.mxu0 %v292
    %310 = vmatpush.bf16.msra.mxu0 %v291
    %311 = vmatpush.bf16.msra.mxu0 %v290
    %312 = vmatpush.bf16.msra.mxu0 %v289
    %313 = vmatmul.bf16.gmra.mxu0 %v238
    %v314 = vpop.f32.mrf.mxu0
    %v315 = vadd.f32 %v256, %v314
    %v316 = vpop.f32.mrf.mxu0
    %v317 = vadd.f32 %v256, %v316
    %318 = vdwg.mxu0
    %v319 = vmax.f32 %v315, 0.0
    %v320 = vmax.f32 %v317, 0.0
    %v321 = vpack.c.bf16 %v320, %v319
    %v322 = vld [vmem:[#allocation2 + $0x100] sm:$0xf]
    %v323 = vld [vmem:[#allocation2 + $0x104] sm:$0xf]
    %v324 = vld [vmem:[#allocation2 + $0x108] sm:$0xf]
    %v325 = vld [vmem:[#allocation2 + $0x10c] sm:$0xf]
    %v326 = vld [vmem:[#allocation2 + $0x110] sm:$0xf]
    %v327 = vld [vmem:[#allocation2 + $0x114] sm:$0xf]
    %v328 = vld [vmem:[#allocation2 + $0x118] sm:$0xf]
    %v329 = vld [vmem:[#allocation2 + $0x11c] sm:$0xf]
    %v330 = vld [vmem:[#allocation2 + $0x120] sm:$0xf]
    %v331 = vld [vmem:[#allocation2 + $0x124] sm:$0xf]
    %v332 = vld [vmem:[#allocation2 + $0x128] sm:$0xf]
    %v333 = vld [vmem:[#allocation2 + $0x12c] sm:$0xf]
    %v334 = vld [vmem:[#allocation2 + $0x130] sm:$0xf]
    %v335 = vld [vmem:[#allocation2 + $0x134] sm:$0xf]
    %v336 = vld [vmem:[#allocation2 + $0x138] sm:$0xf]
    %v337 = vld [vmem:[#allocation2 + $0x13c] sm:$0xf]
    %v338 = vld [vmem:[%s2 + $0x4] sm:$0x1]
    %v339 = vperm.slane %v338, 0
    %v356 = vunpack.c.l.b16 %v322
    %v357 = vunpack.c.l.b16 %v323
    %v358 = vunpack.c.l.b16 %v324
    %v359 = vunpack.c.l.b16 %v325
    %v360 = vunpack.c.l.b16 %v326
    %v361 = vunpack.c.l.b16 %v327
    %v362 = vunpack.c.l.b16 %v328
    %v363 = vunpack.c.l.b16 %v329
    %v364 = vunpack.c.l.b16 %v330
    %v365 = vunpack.c.l.b16 %v331
    %v366 = vunpack.c.l.b16 %v332
    %v367 = vunpack.c.l.b16 %v333
    %v368 = vunpack.c.l.b16 %v334
    %v369 = vunpack.c.l.b16 %v335
    %v370 = vunpack.c.l.b16 %v336
    %v371 = vunpack.c.l.b16 %v337
    %v372 = vpack.c.b16 %v357, %v356
    %v373 = vpack.c.b16 %v359, %v358
    %v374 = vpack.c.b16 %v361, %v360
    %v375 = vpack.c.b16 %v363, %v362
    %v376 = vpack.c.b16 %v365, %v364
    %v377 = vpack.c.b16 %v367, %v366
    %v378 = vpack.c.b16 %v369, %v368
    %v379 = vpack.c.b16 %v371, %v370
    %388 = vmatpush.bf16.msra.mxu0 %v379
    %389 = vmatpush.bf16.msra.mxu0 %v378
    %390 = vmatpush.bf16.msra.mxu0 %v377
    %391 = vmatpush.bf16.msra.mxu0 %v376
    %392 = vmatpush.bf16.msra.mxu0 %v375
    %393 = vmatpush.bf16.msra.mxu0 %v374
    %394 = vmatpush.bf16.msra.mxu0 %v373
    %395 = vmatpush.bf16.msra.mxu0 %v372
    %396 = vmatmul.bf16.gmra.mxu0 %v321
    %v397 = vpop.f32.mrf.mxu0
    %v398 = vadd.f32 %v339, %v397
    %v399 = vpop.f32.mrf.mxu0
    %v400 = vadd.f32 %v339, %v399
    %401 = vdwg.mxu0
    %v402 = vmax.f32 %v398, 0.0
    %v403 = vmax.f32 %v400, 0.0
    %v404 = vpack.c.bf16 %v403, %v402
    %v405 = vld [vmem:[#allocation2 + $0x140] sm:$0xf]
    %v406 = vld [vmem:[#allocation2 + $0x144] sm:$0xf]
    %v407 = vld [vmem:[#allocation2 + $0x148] sm:$0xf]
    %v408 = vld [vmem:[#allocation2 + $0x14c] sm:$0xf]
    %v409 = vld [vmem:[#allocation2 + $0x150] sm:$0xf]
    %v410 = vld [vmem:[#allocation2 + $0x154] sm:$0xf]
    %v411 = vld [vmem:[#allocation2 + $0x158] sm:$0xf]
    %v412 = vld [vmem:[#allocation2 + $0x15c] sm:$0xf]
    %v413 = vld [vmem:[#allocation2 + $0x160] sm:$0xf]
    %v414 = vld [vmem:[#allocation2 + $0x164] sm:$0xf]
    %v415 = vld [vmem:[#allocation2 + $0x168] sm:$0xf]
    %v416 = vld [vmem:[#allocation2 + $0x16c] sm:$0xf]
    %v417 = vld [vmem:[#allocation2 + $0x170] sm:$0xf]
    %v418 = vld [vmem:[#allocation2 + $0x174] sm:$0xf]
    %v419 = vld [vmem:[#allocation2 + $0x178] sm:$0xf]
    %v420 = vld [vmem:[#allocation2 + $0x17c] sm:$0xf]
    %v421 = vld [vmem:[%s2 + $0x5] sm:$0x1]
    %v422 = vperm.slane %v421, 0
    %v439 = vunpack.c.l.b16 %v405
    %v440 = vunpack.c.l.b16 %v406
    %v441 = vunpack.c.l.b16 %v407
    %v442 = vunpack.c.l.b16 %v408
    %v443 = vunpack.c.l.b16 %v409
    %v444 = vunpack.c.l.b16 %v410
    %v445 = vunpack.c.l.b16 %v411
    %v446 = vunpack.c.l.b16 %v412
    %v447 = vunpack.c.l.b16 %v413
    %v448 = vunpack.c.l.b16 %v414
    %v449 = vunpack.c.l.b16 %v415
    %v450 = vunpack.c.l.b16 %v416
    %v451 = vunpack.c.l.b16 %v417
    %v452 = vunpack.c.l.b16 %v418
    %v453 = vunpack.c.l.b16 %v419
    %v454 = vunpack.c.l.b16 %v420
    %v455 = vpack.c.b16 %v440, %v439
    %v456 = vpack.c.b16 %v442, %v441
    %v457 = vpack.c.b16 %v444, %v443
    %v458 = vpack.c.b16 %v446, %v445
    %v459 = vpack.c.b16 %v448, %v447
    %v460 = vpack.c.b16 %v450, %v449
    %v461 = vpack.c.b16 %v452, %v451
    %v462 = vpack.c.b16 %v454, %v453
    %471 = vmatpush.bf16.msra.mxu0 %v462
    %472 = vmatpush.bf16.msra.mxu0 %v461
    %473 = vmatpush.bf16.msra.mxu0 %v460
    %474 = vmatpush.bf16.msra.mxu0 %v459
    %475 = vmatpush.bf16.msra.mxu0 %v458
    %476 = vmatpush.bf16.msra.mxu0 %v457
    %477 = vmatpush.bf16.msra.mxu0 %v456
    %478 = vmatpush.bf16.msra.mxu0 %v455
    %479 = vmatmul.bf16.gmra.mxu0 %v404
    %v480 = vpop.f32.mrf.mxu0
    %v481 = vadd.f32 %v422, %v480
    %v482 = vpop.f32.mrf.mxu0
    %v483 = vadd.f32 %v422, %v482
    %484 = vdwg.mxu0
    %485 = vst [vmem:[%s3] sm:$0xff] %v481
    %486 = vst [vmem:[%s3 + $0x8] sm:$0xff] %v483
    // Predicated region
    $region18: #{network_forward.1} parent=1 // pred_check
      _
    $region19: #{network_forward.1} parent=1 // pred_check_branch
      %488 = sbr.rel (0) target = $region21
    $region20: #{network_forward.1} parent=1 // pred_region
      _
    $region21: #{network_forward.1} parent=1 // pred_fallthru
      _
    // Predicated region
    $region22: #{network_forward.1} parent=1 // pred_check
      _
    $region23: #{network_forward.1} parent=1 // pred_check_branch
      %490 = sbr.rel (0) target = $region25
    $region24: #{network_forward.1} parent=1 // pred_region
      _
    $region25: #{network_forward.1} parent=1 // pred_fallthru
      _
    %491 = vsyncpa [#allocation3], 1

</llo_original>
